<compile_context>
chip_gen: v7x
topology: tpu7x:2x2x1
jax: 0.10.0
libtpu: 0.0.40
codegen_flags: <defaults>
</compile_context>

<pallas_src>
import functools
import math

import jax
import jax.numpy as jnp
from jax.experimental import pallas as pl
from jax.experimental.pallas import tpu as pltpu


NEG_INF = -1.0e30   # running-max init (finite, so (-inf)-(-inf) NaNs cannot appear)
MASKED = -2.0e30    # masked score; strictly < NEG_INF so exp(masked - m_new) == 0 exactly


def _round_up(x, m):
    return ((x + m - 1) // m) * m


def _row_tiling(n, max_tile):
    """Return (row_tile, padded_rows): one full tile if small, else fixed tiles."""
    n8 = _round_up(max(int(n), 1), 8)
    if n8 <= max_tile:
        return n8, n8
    return max_tile, _round_up(int(n), max_tile)


# --------------------------------------------------------------------------- fc1 + norm


def _fc1_l2norm_kernel(x_ref, w_ref, b_ref, o_ref):
    # h = x @ W + b in f32 accumulation (bf16 MXU operands), then L2-normalize rows.
    h = jnp.dot(x_ref[...], w_ref[...], preferred_element_type=jnp.float32)
    h = h + b_ref[...]
    ssq = jnp.sum(h * h, axis=-1, keepdims=True)
    inv = jax.lax.rsqrt(jnp.maximum(ssq, 1e-24))   # == 1 / max(||h||, 1e-12)
    o_ref[...] = (h * inv).astype(o_ref.dtype)


def fc1_l2norm(x, w, b, *, max_tile=1024):
    """x: (N, Din) -> L2-normalized (x @ w + b): (N, Dout) in bf16."""
    n, din = x.shape
    dout = w.shape[1]
    tr, n_pad = _row_tiling(n, max_tile)
    if n_pad != n:
        x = jnp.pad(x, ((0, n_pad - n), (0, 0)))
    out = pl.pallas_call(
        _fc1_l2norm_kernel,
        out_shape=jax.ShapeDtypeStruct((n_pad, dout), jnp.bfloat16),
        grid=(n_pad // tr,),
        in_specs=[
            pl.BlockSpec((tr, din), lambda i: (i, 0)),
            pl.BlockSpec((din, dout), lambda i: (0, 0)),
            pl.BlockSpec((1, dout), lambda i: (0, 0)),
        ],
        out_specs=pl.BlockSpec((tr, dout), lambda i: (i, 0)),
        compiler_params=pltpu.CompilerParams(dimension_semantics=("parallel",)),
    )(x.astype(jnp.bfloat16), w.astype(jnp.bfloat16),
      b.reshape(1, dout).astype(jnp.float32))
    return out[:n]


def _l2norm_kernel(x_ref, o_ref):
    x = x_ref[...].astype(jnp.float32)
    ssq = jnp.sum(x * x, axis=-1, keepdims=True)
    inv = jax.lax.rsqrt(jnp.maximum(ssq, 1e-24))
    o_ref[...] = (x * inv).astype(o_ref.dtype)


def l2norm_bf16(x, *, max_tile=1024):
    """Row-wise F.normalize(p=2) -> bf16 output for the attention MXU operands."""
    n, d = x.shape
    tr, n_pad = _row_tiling(n, max_tile)
    if n_pad != n:
        x = jnp.pad(x, ((0, n_pad - n), (0, 0)))
    out = pl.pallas_call(
        _l2norm_kernel,
        out_shape=jax.ShapeDtypeStruct((n_pad, d), jnp.bfloat16),
        grid=(n_pad // tr,),
        in_specs=[pl.BlockSpec((tr, d), lambda i: (i, 0))],
        out_specs=pl.BlockSpec((tr, d), lambda i: (i, 0)),
        compiler_params=pltpu.CompilerParams(dimension_semantics=("parallel",)),
    )(x)
    return out[:n]


# ------------------------------------------------------------------ window-id packing


def pack_window_ids(coords):
    """Pack (batch, x, y, z) int coords into one collision-free int32 window id."""
    c = coords.astype(jnp.int32)
    c = c - jnp.min(c, axis=0, keepdims=True)
    radix = jnp.max(c, axis=0) + 1
    # TODO(synk): assumes prod(coordinate ranges) fits in int32 (true for typical voxel grids).
    wid = c[:, 0]
    for i in range(1, 4):
        wid = wid * radix[i] + c[:, i]
    return wid


# ----------------------------------------------- flash windowed attention + fc2 epilogue


def _flash_window_attn_fc2_kernel(korder_ref, kcount_ref,
                                  widq_ref, widk_ref, xq_ref, xk_ref,
                                  w2_ref, b2_ref,
                                  attn_o_ref, img_o_ref,
                                  m_ref, l_ref, acc_ref, *, num_heads):
    del korder_ref                      # consumed by the data-dependent index_maps only
    qi = pl.program_id(0)
    ki = pl.program_id(1)

    @pl.when(ki == 0)
    def _init():
        m_ref[...] = jnp.full_like(m_ref, NEG_INF)
        l_ref[...] = jnp.zeros_like(l_ref)
        acc_ref[...] = jnp.zeros_like(acc_ref)

    # Block-sparse skip: only k tiles whose window-id range overlaps this q tile's
    # range are scheduled (first) by the wrapper; the tail of the k axis repeats
    # the last useful tile index (so its block is never re-DMA'd) and is skipped.
    @pl.when(ki < kcount_ref[qi])
    def _update():
        xq = xq_ref[...]                               # (tq, D) bf16 L2-normalized (q=k=v)
        xk = xk_ref[...]                               # (tk, D) bf16
        tq, d = xq.shape
        hd = d // num_heads
        scale = 1.0 / math.sqrt(hd)
        qs = (xq.astype(jnp.float32) * scale).astype(xq.dtype)   # fold 1/sqrt(hd) into q once

        # window_size=1 mask: identical packed window id (single compare per element).
        neg_bias = jnp.where(widq_ref[...] == widk_ref[...],
                             jnp.float32(0.0), jnp.float32(MASKED))   # (tq, tk)

        lane_head = jax.lax.broadcasted_iota(jnp.int32, (1, d), 1) // hd       # (1, D)
        stat_head = jax.lax.broadcasted_iota(jnp.int32, (1, num_heads), 1)     # (1, H)

        m_all = m_ref[...]                             # (tq, H) f32  (single read)
        l_all = l_ref[...]
        m_new_all = m_all
        l_new_all = l_all
        alpha_full = jnp.zeros((tq, d), jnp.float32)
        pv_full = jnp.zeros((tq, d), jnp.float32)

        # Per-head online softmax (static unroll).  Scores contract the full D=128
        # against a head-column-masked K (full MXU depth, no 16-lane operand
        # slices); PV lands in head-h columns of a lane-dense (tq, D) accumulator.
        for h in range(num_heads):
            kh = xk * (lane_head == h).astype(xk.dtype)          # (tk, D): head-h cols only
            s = jax.lax.dot_general(qs, kh, (((1,), (1,)), ((), ())),
                                    preferred_element_type=jnp.float32) + neg_bias
            m_prev = m_all[:, h:h + 1]                           # (tq, 1)
            m_new = jnp.maximum(m_prev, jnp.max(s, axis=-1, keepdims=True))
            alpha = jnp.exp(m_prev - m_new)
            p = jnp.exp(s - m_new)                               # masked scores underflow to 0
            l_new = alpha * l_all[:, h:h + 1] + jnp.sum(p, axis=-1, keepdims=True)
            pv_full = pv_full + jax.lax.dot_general(
                p.astype(kh.dtype), kh, (((1,), (0,)), ((), ())),
                preferred_element_type=jnp.float32)              # head-h columns only
            m_new_all = jnp.where(stat_head == h, m_new, m_new_all)
            l_new_all = jnp.where(stat_head == h, l_new, l_new_all)
            alpha_full = jnp.where(lane_head == h, alpha, alpha_full)

        # Single full-width scratch updates per k tile (no per-head partial stores).
        m_ref[...] = m_new_all
        l_ref[...] = l_new_all
        acc_ref[...] = alpha_full * acc_ref[...] + pv_full

    @pl.when(ki == pl.num_programs(1) - 1)
    def _finalize():
        tq, d = acc_ref.shape
        hd = d // num_heads
        lane_head = jax.lax.broadcasted_iota(jnp.int32, (1, d), 1) // hd
        l_all = l_ref[...]
        l_full = jnp.zeros((tq, d), jnp.float32)
        for h in range(num_heads):
            l_full = jnp.where(lane_head == h, l_all[:, h:h + 1], l_full)
        out = acc_ref[...] / jnp.maximum(l_full, 1e-30)          # exact divide, once per q tile
        attn_o_ref[...] = out.astype(attn_o_ref.dtype)
        # fc_128_256 epilogue fused here (bf16 MXU operands, f32 accumulation).
        img = jnp.dot(out.astype(w2_ref.dtype), w2_ref[...],
                      preferred_element_type=jnp.float32) + b2_ref[...]
        img_o_ref[...] = img.astype(img_o_ref.dtype)


def flash_window_attention_fc2(x_norm, window_ids, w2, b2, *, num_heads):
    """x_norm: (N, D) bf16 normalized features; window_ids: (N,) int32 packed coords.

    Returns (attn_out (N, D) f32, fc2(attn_out) (N, C_img) f32).
    """
    n, d = x_norm.shape
    c_img = w2.shape[1]

    n8 = _round_up(n, 8)
    if n8 <= 256:                       # tiny inputs: single tile
        tq = tk = n_pad = n8
    elif n8 <= 512:                     # >=2 q tiles so both v7x TensorCores get work
        tq = tk = 256
        n_pad = _round_up(n, 256)
    else:
        # tq kept at 256: with block-sparse k skipping the k-side traffic is no
        # longer ~N^2/tq, and 256 bounds the unrolled-temporary VMEM on v5e/v7x.
        tq, tk = 256, 512
        n_pad = _round_up(n, 512)

    pad = n_pad - n
    wid = window_ids.astype(jnp.int32)
    if pad:
        x_norm = jnp.pad(x_norm, ((0, pad), (0, 0)))
        wid = jnp.concatenate([wid, jnp.full((pad,), -1, jnp.int32)])   # sentinel id

    n_q, n_k = n_pad // tq, n_pad // tk

    # Conservative per-tile window-id ranges -> exact-safe block-sparse k schedule
    # (every point's own k tile always overlaps, so no same-window pair is skipped).
    wq = wid.reshape(n_q, tq)
    wk = wid.reshape(n_k, tk)
    qmin, qmax = jnp.min(wq, axis=1), jnp.max(wq, axis=1)
    kmin, kmax = jnp.min(wk, axis=1), jnp.max(wk, axis=1)
    overlap = (qmin[:, None] <= kmax[None, :]) & (kmin[None, :] <= qmax[:, None])
    kcount = jnp.sum(overlap.astype(jnp.int32), axis=1)                  # >= 1 always
    order = jnp.argsort((~overlap).astype(jnp.int32), axis=1).astype(jnp.int32)
    tail = jnp.minimum(jnp.arange(n_k, dtype=jnp.int32)[None, :], kcount[:, None] - 1)
    korder = jnp.take_along_axis(order, tail, axis=1).reshape(-1).astype(jnp.int32)

    wid_q = wid.reshape(n_pad, 1)
    wid_k = wid.reshape(1, n_pad)

    def q_map(qi, ki, ko, kc):
        return (qi, 0)

    def k_feat_map(qi, ki, ko, kc):
        return (ko[qi * n_k + ki], 0)

    def k_wid_map(qi, ki, ko, kc):
        return (0, ko[qi * n_k + ki])

    def const_map(qi, ki, ko, kc):
        return (0, 0)

    kernel = functools.partial(_flash_window_attn_fc2_kernel, num_heads=num_heads)
    attn_out, img_out = pl.pallas_call(
        kernel,
        out_shape=(jax.ShapeDtypeStruct((n_pad, d), jnp.float32),
                   jax.ShapeDtypeStruct((n_pad, c_img), jnp.float32)),
        grid_spec=pltpu.PrefetchScalarGridSpec(
            num_scalar_prefetch=2,
            grid=(n_q, n_k),
            in_specs=[
                pl.BlockSpec((tq, 1), q_map),        # q window ids
                pl.BlockSpec((1, tk), k_wid_map),    # k window ids (data-dependent tile)
                pl.BlockSpec((tq, d), q_map),        # q features
                pl.BlockSpec((tk, d), k_feat_map),   # k/v features (data-dependent tile)
                pl.BlockSpec((d, c_img), const_map),
                pl.BlockSpec((1, c_img), const_map),
            ],
            out_specs=[pl.BlockSpec((tq, d), q_map),
                       pl.BlockSpec((tq, c_img), q_map)],
            scratch_shapes=[
                pltpu.VMEM((tq, num_heads), jnp.float32),   # running max   (per head)
                pltpu.VMEM((tq, num_heads), jnp.float32),   # running denom (per head)
                pltpu.VMEM((tq, d), jnp.float32),           # output accumulator
            ]),
        compiler_params=pltpu.CompilerParams(
            dimension_semantics=("parallel", "arbitrary"),
            vmem_limit_bytes=48 * 1024 * 1024),
    )(korder, kcount, wid_q, wid_k, x_norm, x_norm,
      w2.astype(jnp.bfloat16), b2.reshape(1, c_img).astype(jnp.float32))
    return attn_out[:n], img_out[:n]


# ----------------------------------------------------------------------------- GeM heads


def _image_gem_kernel(x_ref, o_ref, acc_ref, *, eps, hw_total, pad_corr):
    i = pl.program_id(0)

    @pl.when(i == 0)
    def _():
        acc_ref[...] = jnp.zeros_like(acc_ref)

    x = x_ref[...].astype(jnp.float32)              # (B, t_hw, C)
    xc = jnp.maximum(x, eps)
    acc_ref[...] += jnp.sum(xc * xc * xc, axis=1)   # p=3 on the VPU (no transcendentals)

    @pl.when(i == pl.num_programs(0) - 1)
    def _():
        m = (acc_ref[...] - pad_corr) * (1.0 / hw_total)   # exact zero-padding correction
        m = jnp.maximum(m, 1e-30)
        o_ref[...] = jnp.exp(jnp.log(m) * (1.0 / 3.0)).astype(o_ref.dtype)   # m^(1/3), (B,C) only


def image_gem(x_bhwc, eps=1e-6):
    """GeM pooling (p=3) over spatial positions: (B, H, W, C) -> (B, C)."""
    b, hh, ww, c = x_bhwc.shape
    hw = hh * ww
    x = x_bhwc.reshape(b, hw, c)
    t_hw = min(1024, _round_up(hw, 8))
    hw_pad = _round_up(hw, t_hw)
    if hw_pad != hw:        # pad + exact correction instead of a divisor search (bounded VMEM)
        x = jnp.pad(x, ((0, 0), (0, hw_pad - hw), (0, 0)))
    pad_corr = float(hw_pad - hw) * (eps ** 3)
    kernel = functools.partial(_image_gem_kernel, eps=eps,
                               hw_total=float(hw), pad_corr=pad_corr)
    return pl.pallas_call(
        kernel,
        out_shape=jax.ShapeDtypeStruct((b, c), jnp.float32),
        grid=(hw_pad // t_hw,),
        in_specs=[pl.BlockSpec((b, t_hw, c), lambda i: (0, i, 0))],
        out_specs=pl.BlockSpec((b, c), lambda i: (0, 0)),
        scratch_shapes=[pltpu.VMEM((b, c), jnp.float32)],
        compiler_params=pltpu.CompilerParams(dimension_semantics=("arbitrary",)),
    )(x)


def _cloud_gem_kernel(bids_ref, x_ref, o_ref, sum_ref, cnt_ref, *, eps, num_batches):
    i = pl.program_id(0)

    @pl.when(i == 0)
    def _():
        sum_ref[...] = jnp.zeros_like(sum_ref)
        cnt_ref[...] = jnp.zeros_like(cnt_ref)

    x = x_ref[...].astype(jnp.float32)                       # (t_nc, D)
    xc = jnp.maximum(x, eps)
    xp = xc * xc * xc                                        # p=3
    bids = bids_ref[...]                                     # (1, t_nc) int32
    biota = jax.lax.broadcasted_iota(jnp.int32, (num_batches, 1), 0)
    onehot = (bids == biota).astype(jnp.float32)             # (B, t_nc); pad ids (-1) match none
    sum_ref[...] += jnp.dot(onehot, xp, preferred_element_type=jnp.float32)
    cnt_ref[...] += jnp.sum(onehot, axis=-1, keepdims=True)

    @pl.when(i == pl.num_programs(0) - 1)
    def _():
        cnt = jnp.maximum(cnt_ref[...], 1.0)
        m = jnp.maximum(sum_ref[...] / cnt, 1e-30)           # exact divide (once)
        o_ref[...] = jnp.exp(jnp.log(m) * (1.0 / 3.0)).astype(o_ref.dtype)


def cloud_gem(cloud_feat, batch_ids, num_batches, eps=1e-6, max_tile=1024):
    """Per-batch GeM pooling (p=3) over sparse points: (Nc, D) -> (B, D)."""
    nc, d = cloud_feat.shape
    t_nc, nc_pad = _row_tiling(nc, max_tile)
    pad = nc_pad - nc
    x = cloud_feat
    bids = batch_ids.astype(jnp.int32)
    if pad:
        x = jnp.pad(x, ((0, pad), (0, 0)))
        bids = jnp.concatenate([bids, jnp.full((pad,), -1, jnp.int32)])
    bids = bids.reshape(1, nc_pad)
    kernel = functools.partial(_cloud_gem_kernel, eps=eps, num_batches=num_batches)
    return pl.pallas_call(
        kernel,
        out_shape=jax.ShapeDtypeStruct((num_batches, d), jnp.float32),
        grid=(nc_pad // t_nc,),
        in_specs=[
            pl.BlockSpec((1, t_nc), lambda i: (0, i)),
            pl.BlockSpec((t_nc, d), lambda i: (i, 0)),
        ],
        out_specs=pl.BlockSpec((num_batches, d), lambda i: (0, 0)),
        scratch_shapes=[pltpu.VMEM((num_batches, d), jnp.float32),
                        pltpu.VMEM((num_batches, 1), jnp.float32)],
        compiler_params=pltpu.CompilerParams(dimension_semantics=("arbitrary",)),
    )(bids, x)


# ------------------------------------------------------------------------------- module


class FFBGLocalPallas:
    """Pallas/JAX re-implementation of FFBGLocal.forward."""

    def __init__(self, embed_dim, image_dim, key):
        assert embed_dim % 128 == 0 and image_dim % 128 == 0
        self.embed_dim = embed_dim
        self.image_dim = image_dim
        self.num_heads = 8
        assert embed_dim % self.num_heads == 0
        k1, k2, k3, k4 = jax.random.split(key, 4)
        # fc_256_128 : image_dim -> embed_dim ; fc_128_256 : embed_dim -> image_dim
        self.fc1_w = jax.random.normal(k1, (image_dim, embed_dim), jnp.float32) / jnp.sqrt(image_dim)
        self.fc1_b = jax.random.normal(k2, (embed_dim,), jnp.float32) * 0.01
        self.fc2_w = jax.random.normal(k3, (embed_dim, image_dim), jnp.float32) / jnp.sqrt(embed_dim)
        self.fc2_b = jax.random.normal(k4, (image_dim,), jnp.float32) * 0.01

    def __call__(self, image_feat_nchw, cloud_feat, cloud_coords):
        B, C_img, H, W = image_feat_nchw.shape
        assert C_img == self.image_dim
        Nc, D = cloud_feat.shape
        assert D == self.embed_dim
        n_img = B * H * W

        # ---- image branch: one NCHW -> NHWC transpose at the module boundary, NHWC inside
        img_flat = jnp.transpose(image_feat_nchw, (0, 2, 3, 1)).reshape(n_img, C_img)
        img_norm = fc1_l2norm(img_flat, self.fc1_w, self.fc1_b)         # (n_img, D) bf16

        # ---- cloud branch: L2-normalize (bf16)
        cloud_norm = l2norm_bf16(cloud_feat)                            # (Nc, D) bf16

        # ---- window coords: image points -> (b, 0, 0, 0); cloud points -> their coords.
        # (Matches the reference: a cloud point at (b,0,0,0) joins that batch's image window.)
        img_batch = jnp.repeat(jnp.arange(B, dtype=jnp.int32), H * W)
        img_coords = jnp.concatenate(
            [img_batch[:, None], jnp.zeros((n_img, 3), jnp.int32)], axis=1)
        fusion_coords = jnp.concatenate([img_coords, cloud_coords.astype(jnp.int32)], axis=0)
        window_ids = pack_window_ids(fusion_coords)                     # (N,) int32

        # ---- fused flash-tiled, block-sparse windowed MHA (q=k=v) + fc_128_256 epilogue
        x_norm = jnp.concatenate([img_norm, cloud_norm], axis=0)        # (N, D) bf16
        attn_out, img_fc2 = flash_window_attention_fc2(
            x_norm, window_ids, self.fc2_w, self.fc2_b, num_heads=self.num_heads)

        output_cloud_feat = attn_out[n_img:]                            # (Nc, D)
        out_img_nhwc = img_fc2[:n_img].reshape(B, H, W, C_img)
        output_image_feat = jnp.transpose(out_img_nhwc, (0, 3, 1, 2))   # back to NCHW (API)
        assert output_image_feat.shape == image_feat_nchw.shape

        # ---- GeM descriptors
        # TODO(synk): MinkSpconvGeM may include a sparse conv before pooling; modeled here
        # as per-batch GeM pooling over the attended point features.
        image_feat_gem = image_gem(out_img_nhwc)                        # (B, image_dim)
        cloud_feat_gem = cloud_gem(output_cloud_feat,
                                   cloud_coords[:, 0].astype(jnp.int32), B)  # (B, embed_dim)

        return {
            "image_feat": output_image_feat,
            "cloud_feat": output_cloud_feat,
            "image_feat_gem": image_feat_gem,
            "cloud_feat_gem": cloud_feat_gem,
        }


# ------------------------------------------------------------------------------- driver

if __name__ == "__main__":
    key = jax.random.PRNGKey(0)
    k_par, k_img, k_cld, k_crd = jax.random.split(key, 4)

    embed_dim = 128   # embed_dim of the sptr attention / cloud features
    image_dim = 256   # channel dim of the image feature map
    B, H, W = 2, 8, 8
    Nc = 32           # number of sparse cloud points

    model = FFBGLocalPallas(embed_dim, image_dim, k_par)

    image_feat = jax.random.normal(k_img, (B, image_dim, H, W), jnp.float32)   # NCHW
    cloud_feat = jax.random.normal(k_cld, (Nc, embed_dim), jnp.float32)
    cloud_batch = jnp.repeat(jnp.arange(B, dtype=jnp.int32), Nc // B)
    cloud_xyz = jax.random.randint(k_crd, (Nc, 3), 0, 8, dtype=jnp.int32)
    cloud_coords = jnp.concatenate([cloud_batch[:, None], cloud_xyz], axis=1)  # [b, x, y, z]

    out = model(image_feat, cloud_feat, cloud_coords)
    out = jax.tree_util.tree_map(jax.block_until_ready, out)

    assert out["image_feat"].shape == (B, image_dim, H, W)
    assert out["cloud_feat"].shape == (Nc, embed_dim)
    assert out["image_feat_gem"].shape == (B, image_dim)
    assert out["cloud_feat_gem"].shape == (B, embed_dim)
    assert all(bool(jnp.all(jnp.isfinite(v))) for v in out.values())
    print("KERNEL_OK")
</pallas_src>

<mosaic_0001>
module attributes {stable_mosaic.version = 11 : i64} {
  func.func @_fc1_l2norm_kernel(%arg0: i32, %arg1: memref<128x256xbf16, #tpu.memory_space<vmem>>, %arg2: memref<256x128xbf16, #tpu.memory_space<vmem>>, %arg3: memref<1x128xf32, #tpu.memory_space<vmem>>, %arg4: memref<128x128xbf16, #tpu.memory_space<vmem>>) attributes {dimension_semantics = [#tpu.dimension_semantics<parallel>], iteration_bounds = array<i64: 1>, scalar_prefetch = 0 : i64, scratch_operands = 0 : i64, tpu.core_type = #tpu.core_type<tc>, window_params = [{transform_indices = @transform_0, window_bounds = array<i64: 128, 256>}, {pipeline_mode = #tpu.pipeline_mode<synchronous>, transform_indices = @transform_1, window_bounds = array<i64: 256, 128>}, {pipeline_mode = #tpu.pipeline_mode<synchronous>, transform_indices = @transform_2, window_bounds = array<i64: 1, 128>}, {transform_indices = @transform_3, window_bounds = array<i64: 128, 128>}]} {
    %c0 = arith.constant 0 : index
    %c0_0 = arith.constant 0 : index
    %0 = vector.load %arg1[%c0, %c0_0] : memref<128x256xbf16, #tpu.memory_space<vmem>>, vector<128x256xbf16>
    %c0_1 = arith.constant 0 : index
    %c0_2 = arith.constant 0 : index
    %1 = vector.load %arg2[%c0_1, %c0_2] : memref<256x128xbf16, #tpu.memory_space<vmem>>, vector<256x128xbf16>
    %cst = arith.constant dense<0.000000e+00> : vector<128x128xf32>
    %2 = tpu.matmul %0, %1, %cst {dimension_numbers = #tpu.dot_dimension_numbers<[1], [0], [0], [1], [0, 0, 1, 1], [], []>} : vector<128x256xbf16>, vector<256x128xbf16>, vector<128x128xf32> -> vector<128x128xf32>
    %c0_3 = arith.constant 0 : index
    %c0_4 = arith.constant 0 : index
    %3 = vector.load %arg3[%c0_3, %c0_4] : memref<1x128xf32, #tpu.memory_space<vmem>>, vector<1x128xf32>
    %4 = vector.broadcast %3 : vector<1x128xf32> to vector<128x128xf32>
    %5 = arith.addf %2, %4 : vector<128x128xf32>
    %6 = arith.mulf %5, %5 : vector<128x128xf32>
    %cst_5 = arith.constant dense<0.000000e+00> : vector<128xf32>
    %7 = vector.multi_reduction <add>, %6, %cst_5 [1] : vector<128x128xf32> to vector<128xf32>
    %8 = vector.shape_cast %7 : vector<128xf32> to vector<128x1xf32>
    %cst_6 = arith.constant 1.000000e-24 : f32
    %9 = vector.broadcast %cst_6 : f32 to vector<128x1xf32>
    %10 = arith.maximumf %8, %9 : vector<128x1xf32>
    %11 = math.rsqrt %10 : vector<128x1xf32>
    %12 = vector.broadcast %11 : vector<128x1xf32> to vector<128x128xf32>
    %13 = arith.mulf %5, %12 : vector<128x128xf32>
    %14 = arith.truncf %13 : vector<128x128xf32> to vector<128x128xbf16>
    %c0_7 = arith.constant 0 : index
    %c0_8 = arith.constant 0 : index
    %15 = vector.load %arg4[%c0_7, %c0_8] : memref<128x128xbf16, #tpu.memory_space<vmem>>, vector<128x128xbf16>
    tpu.vector_store %arg4[%c0_7, %c0_8], %14 {strides = array<i32>} : memref<128x128xbf16, #tpu.memory_space<vmem>>, vector<128x128xbf16>,
    return
  }
  func.func @transform_0(%arg0: i32) -> (i32, i32) {
    %c0_i32 = arith.constant 0 : i32
    %c0_i32_0 = arith.constant 0 : i32
    return %arg0, %c0_i32 : i32, i32
  }
  func.func @transform_1(%arg0: i32) -> (i32, i32) {
    %c0_i32 = arith.constant 0 : i32
    %c0_i32_0 = arith.constant 0 : i32
    %c0_i32_1 = arith.constant 0 : i32
    return %c0_i32, %c0_i32_0 : i32, i32
  }
  func.func @transform_2(%arg0: i32) -> (i32, i32) {
    %c0_i32 = arith.constant 0 : i32
    %c0_i32_0 = arith.constant 0 : i32
    %c0_i32_1 = arith.constant 0 : i32
    return %c0_i32, %c0_i32_0 : i32, i32
  }
  func.func @transform_3(%arg0: i32) -> (i32, i32) {
    %c0_i32 = arith.constant 0 : i32
    %c0_i32_0 = arith.constant 0 : i32
    return %arg0, %c0_i32 : i32, i32
  }
}

</mosaic_0001>

<llo_original>
// kernel: tpu_custom_call.1
$region0: #{tpu_custom_call.1}
  #allocation0 [shape = 'u32[]', space=smem, size = 0x4, offset = 0x4, fixed_abs, tag = 'smem constant byte address 0x4 - core index']
  #allocation1 [shape = 'u32[144,128]{1,0:T(1,128)}', space=vmem, size = 0x12000, scoped, tag = 'internal scratch']
  %s0 = inlined_call_operand.hbm [shape: bf16[128,256], index: 0, kind: input, shape index: {}]
  %s1 = inlined_call_operand.hbm [shape: bf16[256,128], index: 1, kind: input, shape index: {}]
  %s2 = inlined_call_operand.vmem [shape: f32[1,128], index: 2, kind: input, shape index: {}]
  %s3 = inlined_call_operand.hbm [shape: bf16[128,128], index: 3, kind: output, shape index: {}]
  %s4 = sld [smem:[#allocation0]]
  $region30: #{tpu_custom_call.1} parent=0
    _
  %s6 = ssub.s32 1, %s4
  %s7 = scalar_select 0, %s6, %s4
  $region1: #{tpu_custom_call.1} parent=0
    #allocation2 [shape = 'u8[65536]{0}', space=vmem, size = 0x10000, scoped, tag = 'input window, operand 0, single buffered']
    #allocation3 [shape = 's32[1]{0}', space=sflag, size = 0x4, scoped, tag = 'scoped memory for tpu_custom_call.1']
    #allocation4 [shape = 's32[1]{0}', space=sflag, size = 0x4, scoped, tag = 'scoped memory for tpu_custom_call.1']
    #allocation5 [shape = 'u8[65536]{0}', space=vmem, size = 0x10000, scoped, tag = 'input window, operand 1, single buffered']
    #allocation6 [shape = 's32[1]{0}', space=sflag, size = 0x4, scoped, tag = 'scoped memory for tpu_custom_call.1']
    #allocation7 [shape = 'u8[32768]{0}', space=vmem, size = 0x8000, scoped, tag = 'output window, operand 0, single buffered']
    %8 = vsyncpa [#allocation3], 0
    %9 = vsyncpa [#allocation6], 0
    %10 = vsyncpa [#allocation4], 0
    // Predicated region
    $region2: #{tpu_custom_call.1} parent=1 // pred_check
      _
    $region3: #{tpu_custom_call.1} parent=1 // pred_check_branch
      %12 = sbr.rel (0) target = $region5
    $region4: #{tpu_custom_call.1} parent=1 // pred_region
      %s14 = ssub.s32 2048, 2048
      %15 = vsyncadd [#allocation3], %s14
      %s16 = sshll.u32 [#allocation2], 4
      %s17 = int_to_ptr.vmem [resolvable:$true] %s16
      %22 = dma.hbm_to_vmem [thread:$0]  %s0, 2048, %s17, [#allocation3], 128, 128, 8
    $region5: #{tpu_custom_call.1} parent=1 // pred_fallthru
      _
    // Predicated region
    $region6: #{tpu_custom_call.1} parent=1 // pred_check
      _
    $region7: #{tpu_custom_call.1} parent=1 // pred_check_branch
      %24 = sbr.rel (0) target = $region9
    $region8: #{tpu_custom_call.1} parent=1 // pred_region
      %s26 = ssub.s32 2048, 2048
      %27 = vsyncadd [#allocation6], %s26
      %s28 = sshll.u32 [#allocation5], 4
      %s29 = int_to_ptr.vmem [resolvable:$true] %s28
      %34 = dma.hbm_to_vmem [thread:$0]  %s1, 2048, %s29, [#allocation6], 64, 64, 4
    $region9: #{tpu_custom_call.1} parent=1 // pred_fallthru
      _
    // Predicated region
    $region10: #{tpu_custom_call.1} parent=1 // pred_check
      _
    $region11: #{tpu_custom_call.1} parent=1 // pred_check_branch
      %36 = sbr.rel (0) target = $region13
    $region12: #{tpu_custom_call.1} parent=1 // pred_region
      _
    $region13: #{tpu_custom_call.1} parent=1 // pred_fallthru
      _
    // Predicated region
    $region14: #{tpu_custom_call.1} parent=1 // pred_check
      _
    $region15: #{tpu_custom_call.1} parent=1 // pred_check_branch
      %38 = sbr.rel (0) target = $region17
    $region16: #{tpu_custom_call.1} parent=1 // pred_region
      %39 = dma.done [#allocation3], 2048
    $region17: #{tpu_custom_call.1} parent=1 // pred_fallthru
      _
    // Predicated region
    $region18: #{tpu_custom_call.1} parent=1 // pred_check
      _
    $region19: #{tpu_custom_call.1} parent=1 // pred_check_branch
      %41 = sbr.rel (0) target = $region21
    $region20: #{tpu_custom_call.1} parent=1 // pred_region
      %42 = dma.done [#allocation6], 2048
    $region21: #{tpu_custom_call.1} parent=1 // pred_fallthru
      _
    %v44 = vld [vmem:[#allocation2] sm:$0xff]
    %v45 = vld [vmem:[#allocation2 + $0x8] sm:$0xff]
    %v46 = vld [vmem:[#allocation2 + $0x10] sm:$0xff]
    %v47 = vld [vmem:[#allocation2 + $0x18] sm:$0xff]
    %v48 = vld [vmem:[#allocation2 + $0x20] sm:$0xff]
    %v49 = vld [vmem:[#allocation2 + $0x28] sm:$0xff]
    %v50 = vld [vmem:[#allocation2 + $0x30] sm:$0xff]
    %v51 = vld [vmem:[#allocation2 + $0x38] sm:$0xff]
    %v52 = vld [vmem:[#allocation2 + $0x40] sm:$0xff]
    %v53 = vld [vmem:[#allocation2 + $0x48] sm:$0xff]
    %v54 = vld [vmem:[#allocation2 + $0x50] sm:$0xff]
    %v55 = vld [vmem:[#allocation2 + $0x58] sm:$0xff]
    %v56 = vld [vmem:[#allocation2 + $0x60] sm:$0xff]
    %v57 = vld [vmem:[#allocation2 + $0x68] sm:$0xff]
    %v58 = vld [vmem:[#allocation2 + $0x70] sm:$0xff]
    %v59 = vld [vmem:[#allocation2 + $0x78] sm:$0xff]
    %v60 = vld [vmem:[#allocation5] sm:$0xf]
    %v61 = vld [vmem:[#allocation5 + $0x4] sm:$0xf]
    %v62 = vld [vmem:[#allocation5 + $0x8] sm:$0xf]
    %v63 = vld [vmem:[#allocation5 + $0xc] sm:$0xf]
    %v64 = vld [vmem:[#allocation5 + $0x10] sm:$0xf]
    %v65 = vld [vmem:[#allocation5 + $0x14] sm:$0xf]
    %v66 = vld [vmem:[#allocation5 + $0x18] sm:$0xf]
    %v67 = vld [vmem:[#allocation5 + $0x1c] sm:$0xf]
    %v68 = vld [vmem:[#allocation5 + $0x20] sm:$0xf]
    %v69 = vld [vmem:[#allocation5 + $0x24] sm:$0xf]
    %v70 = vld [vmem:[#allocation5 + $0x28] sm:$0xf]
    %v71 = vld [vmem:[#allocation5 + $0x2c] sm:$0xf]
    %v72 = vld [vmem:[#allocation5 + $0x30] sm:$0xf]
    %v73 = vld [vmem:[#allocation5 + $0x34] sm:$0xf]
    %v74 = vld [vmem:[#allocation5 + $0x38] sm:$0xf]
    %v75 = vld [vmem:[#allocation5 + $0x3c] sm:$0xf]
    %v76 = vld [vmem:[#allocation5 + $0x40] sm:$0xf]
    %v77 = vld [vmem:[#allocation5 + $0x44] sm:$0xf]
    %v78 = vld [vmem:[#allocation5 + $0x48] sm:$0xf]
    %v79 = vld [vmem:[#allocation5 + $0x4c] sm:$0xf]
    %v80 = vld [vmem:[#allocation5 + $0x50] sm:$0xf]
    %v81 = vld [vmem:[#allocation5 + $0x54] sm:$0xf]
    %v82 = vld [vmem:[#allocation5 + $0x58] sm:$0xf]
    %v83 = vld [vmem:[#allocation5 + $0x5c] sm:$0xf]
    %v84 = vld [vmem:[#allocation5 + $0x60] sm:$0xf]
    %v85 = vld [vmem:[#allocation5 + $0x64] sm:$0xf]
    %v86 = vld [vmem:[#allocation5 + $0x68] sm:$0xf]
    %v87 = vld [vmem:[#allocation5 + $0x6c] sm:$0xf]
    %v88 = vld [vmem:[#allocation5 + $0x70] sm:$0xf]
    %v89 = vld [vmem:[#allocation5 + $0x74] sm:$0xf]
    %v90 = vld [vmem:[#allocation5 + $0x78] sm:$0xf]
    %v91 = vld [vmem:[#allocation5 + $0x7c] sm:$0xf]
    %v92 = vld [vmem:[%s2] sm:$0x1]
    %v94 = vlaneseq
    %v95 = vshrl.u32 %v94, 7
    %v96 = vsub.s32 0, %v95
    %v97 = vrot.slane %v92, %v96
    %v115 = vunpack.c.l.b16 %v44
    %v116 = vunpack.c.h.b16 %v44
    %v117 = vunpack.c.l.b16 %v45
    %v118 = vunpack.c.h.b16 %v45
    %v119 = vunpack.c.l.b16 %v46
    %v120 = vunpack.c.h.b16 %v46
    %v121 = vunpack.c.l.b16 %v47
    %v122 = vunpack.c.h.b16 %v47
    %v123 = vunpack.c.l.b16 %v48
    %v124 = vunpack.c.h.b16 %v48
    %v125 = vunpack.c.l.b16 %v49
    %v126 = vunpack.c.h.b16 %v49
    %v127 = vunpack.c.l.b16 %v50
    %v128 = vunpack.c.h.b16 %v50
    %v129 = vunpack.c.l.b16 %v51
    %v130 = vunpack.c.h.b16 %v51
    %v131 = vunpack.c.l.b16 %v52
    %v132 = vunpack.c.h.b16 %v52
    %v133 = vunpack.c.l.b16 %v53
    %v134 = vunpack.c.h.b16 %v53
    %v135 = vunpack.c.l.b16 %v54
    %v136 = vunpack.c.h.b16 %v54
    %v137 = vunpack.c.l.b16 %v55
    %v138 = vunpack.c.h.b16 %v55
    %v139 = vunpack.c.l.b16 %v56
    %v140 = vunpack.c.h.b16 %v56
    %v141 = vunpack.c.l.b16 %v57
    %v142 = vunpack.c.h.b16 %v57
    %v143 = vunpack.c.l.b16 %v58
    %v144 = vunpack.c.h.b16 %v58
    %v145 = vunpack.c.l.b16 %v59
    %v146 = vunpack.c.h.b16 %v59
    %v147 = vpack.c.b16 %v117, %v115
    %v148 = vpack.c.b16 %v118, %v116
    %v149 = vpack.c.b16 %v121, %v119
    %v150 = vpack.c.b16 %v122, %v120
    %v151 = vpack.c.b16 %v125, %v123
    %v152 = vpack.c.b16 %v126, %v124
    %v153 = vpack.c.b16 %v129, %v127
    %v154 = vpack.c.b16 %v130, %v128
    %v155 = vpack.c.b16 %v133, %v131
    %v156 = vpack.c.b16 %v134, %v132
    %v157 = vpack.c.b16 %v137, %v135
    %v158 = vpack.c.b16 %v138, %v136
    %v159 = vpack.c.b16 %v141, %v139
    %v160 = vpack.c.b16 %v142, %v140
    %v161 = vpack.c.b16 %v145, %v143
    %v162 = vpack.c.b16 %v146, %v144
    %v211 = vunpack.c.l.b16 %v60
    %v212 = vunpack.c.l.b16 %v61
    %v213 = vunpack.c.l.b16 %v62
    %v214 = vunpack.c.l.b16 %v63
    %v215 = vunpack.c.l.b16 %v64
    %v216 = vunpack.c.l.b16 %v65
    %v217 = vunpack.c.l.b16 %v66
    %v218 = vunpack.c.l.b16 %v67
    %v219 = vunpack.c.l.b16 %v68
    %v220 = vunpack.c.l.b16 %v69
    %v221 = vunpack.c.l.b16 %v70
    %v222 = vunpack.c.l.b16 %v71
    %v223 = vunpack.c.l.b16 %v72
    %v224 = vunpack.c.l.b16 %v73
    %v225 = vunpack.c.l.b16 %v74
    %v226 = vunpack.c.l.b16 %v75
    %v227 = vunpack.c.l.b16 %v76
    %v228 = vunpack.c.l.b16 %v77
    %v229 = vunpack.c.l.b16 %v78
    %v230 = vunpack.c.l.b16 %v79
    %v231 = vunpack.c.l.b16 %v80
    %v232 = vunpack.c.l.b16 %v81
    %v233 = vunpack.c.l.b16 %v82
    %v234 = vunpack.c.l.b16 %v83
    %v235 = vunpack.c.l.b16 %v84
    %v236 = vunpack.c.l.b16 %v85
    %v237 = vunpack.c.l.b16 %v86
    %v238 = vunpack.c.l.b16 %v87
    %v239 = vunpack.c.l.b16 %v88
    %v240 = vunpack.c.l.b16 %v89
    %v241 = vunpack.c.l.b16 %v90
    %v242 = vunpack.c.l.b16 %v91
    %v243 = vpack.c.b16 %v212, %v211
    %v244 = vpack.c.b16 %v214, %v213
    %v245 = vpack.c.b16 %v216, %v215
    %v246 = vpack.c.b16 %v218, %v217
    %v247 = vpack.c.b16 %v220, %v219
    %v248 = vpack.c.b16 %v222, %v221
    %v249 = vpack.c.b16 %v224, %v223
    %v250 = vpack.c.b16 %v226, %v225
    %v251 = vpack.c.b16 %v228, %v227
    %v252 = vpack.c.b16 %v230, %v229
    %v253 = vpack.c.b16 %v232, %v231
    %v254 = vpack.c.b16 %v234, %v233
    %v255 = vpack.c.b16 %v236, %v235
    %v256 = vpack.c.b16 %v238, %v237
    %v257 = vpack.c.b16 %v240, %v239
    %v258 = vpack.c.b16 %v242, %v241
    %275 = vmatprep.subr.bf16.mxu0 0
    %276 = vmatpush1.bf16.msra.mxu0 %v243
    %277 = vmatprep.subr.bf16.mxu0 0
    %278 = vmatpush1.bf16.msra.mxu0 %v244
    %279 = vmatprep.subr.bf16.mxu0 0
    %280 = vmatpush1.bf16.msra.mxu0 %v245
    %281 = vmatprep.subr.bf16.mxu0 0
    %282 = vmatpush1.bf16.msra.mxu0 %v246
    %283 = vmatprep.subr.bf16.mxu0 0
    %284 = vmatpush1.bf16.msra.mxu0 %v247
    %285 = vmatprep.subr.bf16.mxu0 0
    %286 = vmatpush1.bf16.msra.mxu0 %v248
    %287 = vmatprep.subr.bf16.mxu0 0
    %288 = vmatpush1.bf16.msra.mxu0 %v249
    %289 = vmatprep.subr.bf16.mxu0 0
    %290 = vmatpush1.bf16.msra.mxu0 %v250
    %291 = vmatprep.subr.bf16.mxu0 0
    %292 = vmatpush1.bf16.msra.mxu0 %v251
    %293 = vmatprep.subr.bf16.mxu0 0
    %294 = vmatpush1.bf16.msra.mxu0 %v252
    %295 = vmatprep.subr.bf16.mxu0 0
    %296 = vmatpush1.bf16.msra.mxu0 %v253
    %297 = vmatprep.subr.bf16.mxu0 0
    %298 = vmatpush1.bf16.msra.mxu0 %v254
    %299 = vmatprep.subr.bf16.mxu0 0
    %300 = vmatpush1.bf16.msra.mxu0 %v255
    %301 = vmatprep.subr.bf16.mxu0 0
    %302 = vmatpush1.bf16.msra.mxu0 %v256
    %303 = vmatprep.subr.bf16.mxu0 0
    %304 = vmatpush1.bf16.msra.mxu0 %v257
    %305 = vmatprep.subr.bf16.mxu0 0
    %306 = vmatpush1.bf16.msra.mxu0 %v258
    %307 = vmatprep.mubr.bf16.mxu0 %v148
    %308 = vmatmul.mubr.bf16.gmra.mrb[0].mxu0 %v147
    %v309 = vpop.f32.mrb[0].mxu0
    %v310 = vadd.f32 %v97, %v309
    %v311 = vpop.f32.mrb[0].mxu0
    %v312 = vpop.f32.mrb[0].mxu0
    %v313 = vadd.f32 %v97, %v312
    %v314 = vpop.f32.mrb[0].mxu0
    %315 = vmatprep.mubr.bf16.mxu0 %v150
    %316 = vmatmul.mubr.bf16.gmra.mrb[0].mxu0 %v149
    %v317 = vpop.f32.mrb[0].mxu0
    %v318 = vadd.f32 %v97, %v317
    %v319 = vpop.f32.mrb[0].mxu0
    %v320 = vpop.f32.mrb[0].mxu0
    %v321 = vadd.f32 %v97, %v320
    %v322 = vpop.f32.mrb[0].mxu0
    %323 = vmatprep.mubr.bf16.mxu0 %v152
    %324 = vmatmul.mubr.bf16.gmra.mrb[0].mxu0 %v151
    %v325 = vpop.f32.mrb[0].mxu0
    %v326 = vadd.f32 %v97, %v325
    %v327 = vpop.f32.mrb[0].mxu0
    %v328 = vpop.f32.mrb[0].mxu0
    %v329 = vadd.f32 %v97, %v328
    %v330 = vpop.f32.mrb[0].mxu0
    %331 = vmatprep.mubr.bf16.mxu0 %v154
    %332 = vmatmul.mubr.bf16.gmra.mrb[0].mxu0 %v153
    %v333 = vpop.f32.mrb[0].mxu0
    %v334 = vadd.f32 %v97, %v333
    %v335 = vpop.f32.mrb[0].mxu0
    %v336 = vpop.f32.mrb[0].mxu0
    %v337 = vadd.f32 %v97, %v336
    %v338 = vpop.f32.mrb[0].mxu0
    %339 = vmatprep.mubr.bf16.mxu0 %v156
    %340 = vmatmul.mubr.bf16.gmra.mrb[0].mxu0 %v155
    %v341 = vpop.f32.mrb[0].mxu0
    %v342 = vadd.f32 %v97, %v341
    %v343 = vpop.f32.mrb[0].mxu0
    %v344 = vpop.f32.mrb[0].mxu0
    %v345 = vadd.f32 %v97, %v344
    %v346 = vpop.f32.mrb[0].mxu0
    %347 = vmatprep.mubr.bf16.mxu0 %v158
    %348 = vmatmul.mubr.bf16.gmra.mrb[0].mxu0 %v157
    %v349 = vpop.f32.mrb[0].mxu0
    %v350 = vadd.f32 %v97, %v349
    %v351 = vpop.f32.mrb[0].mxu0
    %v352 = vpop.f32.mrb[0].mxu0
    %v353 = vadd.f32 %v97, %v352
    %v354 = vpop.f32.mrb[0].mxu0
    %355 = vmatprep.mubr.bf16.mxu0 %v160
    %356 = vmatmul.mubr.bf16.gmra.mrb[0].mxu0 %v159
    %v357 = vpop.f32.mrb[0].mxu0
    %v358 = vadd.f32 %v97, %v357
    %v359 = vpop.f32.mrb[0].mxu0
    %v360 = vpop.f32.mrb[0].mxu0
    %v361 = vadd.f32 %v97, %v360
    %v362 = vpop.f32.mrb[0].mxu0
    %363 = vmatprep.mubr.bf16.mxu0 %v162
    %364 = vmatmul.mubr.bf16.gmra.mrb[0].mxu0 %v161
    %v365 = vpop.f32.mrb[0].mxu0
    %v366 = vadd.f32 %v97, %v365
    %v367 = vpop.f32.mrb[0].mxu0
    %v368 = vpop.f32.mrb[0].mxu0
    %v369 = vadd.f32 %v97, %v368
    %v370 = vpop.f32.mrb[0].mxu0
    %371 = vdwg.mxu0
    %v372 = vmul.f32 %v310, %v310
    %v373 = vmul.f32 %v313, %v313
    %v374 = vmul.f32 %v318, %v318
    %v375 = vmul.f32 %v321, %v321
    %v376 = vmul.f32 %v326, %v326
    %v377 = vmul.f32 %v329, %v329
    %v378 = vmul.f32 %v334, %v334
    %v379 = vmul.f32 %v337, %v337
    %v380 = vmul.f32 %v342, %v342
    %v381 = vmul.f32 %v345, %v345
    %v382 = vmul.f32 %v350, %v350
    %v383 = vmul.f32 %v353, %v353
    %v384 = vmul.f32 %v358, %v358
    %v385 = vmul.f32 %v361, %v361
    %v386 = vmul.f32 %v366, %v366
    %v387 = vmul.f32 %v369, %v369
    %388 = vadd.xlane.f32.xlu0 %v372
    %v389 = vpop.xlane.xlu0 %388
    %390 = vadd.xlane.f32.xlu0 %v373
    %v391 = vpop.xlane.xlu0 %390
    %392 = vadd.xlane.f32.xlu0 %v374
    %v393 = vpop.xlane.xlu0 %392
    %394 = vadd.xlane.f32.xlu0 %v375
    %v395 = vpop.xlane.xlu0 %394
    %396 = vadd.xlane.f32.xlu0 %v376
    %v397 = vpop.xlane.xlu0 %396
    %398 = vadd.xlane.f32.xlu0 %v377
    %v399 = vpop.xlane.xlu0 %398
    %400 = vadd.xlane.f32.xlu0 %v378
    %v401 = vpop.xlane.xlu0 %400
    %402 = vadd.xlane.f32.xlu0 %v379
    %v403 = vpop.xlane.xlu0 %402
    %404 = vadd.xlane.f32.xlu0 %v380
    %v405 = vpop.xlane.xlu0 %404
    %406 = vadd.xlane.f32.xlu0 %v381
    %v407 = vpop.xlane.xlu0 %406
    %408 = vadd.xlane.f32.xlu0 %v382
    %v409 = vpop.xlane.xlu0 %408
    %410 = vadd.xlane.f32.xlu0 %v383
    %v411 = vpop.xlane.xlu0 %410
    %412 = vadd.xlane.f32.xlu0 %v384
    %v413 = vpop.xlane.xlu0 %412
    %414 = vadd.xlane.f32.xlu0 %v385
    %v415 = vpop.xlane.xlu0 %414
    %416 = vadd.xlane.f32.xlu0 %v386
    %v417 = vpop.xlane.xlu0 %416
    %418 = vadd.xlane.f32.xlu0 %v387
    %v419 = vpop.xlane.xlu0 %418
    %v420 = vmax.f32 %v389, 1e-24
    %v421 = vmax.f32 %v391, 1e-24
    %v422 = vmax.f32 %v393, 1e-24
    %v423 = vmax.f32 %v395, 1e-24
    %v424 = vmax.f32 %v397, 1e-24
    %v425 = vmax.f32 %v399, 1e-24
    %v426 = vmax.f32 %v401, 1e-24
    %v427 = vmax.f32 %v403, 1e-24
    %v428 = vmax.f32 %v405, 1e-24
    %v429 = vmax.f32 %v407, 1e-24
    %v430 = vmax.f32 %v409, 1e-24
    %v431 = vmax.f32 %v411, 1e-24
    %v432 = vmax.f32 %v413, 1e-24
    %v433 = vmax.f32 %v415, 1e-24
    %v434 = vmax.f32 %v417, 1e-24
    %v435 = vmax.f32 %v419, 1e-24
    %v436 = vrsqrt.pop %v420
    %v437 = vrsqrt.pop %v421
    %v438 = vrsqrt.pop %v422
    %v439 = vrsqrt.pop %v423
    %v440 = vrsqrt.pop %v424
    %v441 = vrsqrt.pop %v425
    %v442 = vrsqrt.pop %v426
    %v443 = vrsqrt.pop %v427
    %v444 = vrsqrt.pop %v428
    %v445 = vrsqrt.pop %v429
    %v446 = vrsqrt.pop %v430
    %v447 = vrsqrt.pop %v431
    %v448 = vrsqrt.pop %v432
    %v449 = vrsqrt.pop %v433
    %v450 = vrsqrt.pop %v434
    %v451 = vrsqrt.pop %v435
    %v452 = vmul.f32 %v310, %v436
    %v453 = vmul.f32 %v313, %v437
    %v454 = vmul.f32 %v318, %v438
    %v455 = vmul.f32 %v321, %v439
    %v456 = vmul.f32 %v326, %v440
    %v457 = vmul.f32 %v329, %v441
    %v458 = vmul.f32 %v334, %v442
    %v459 = vmul.f32 %v337, %v443
    %v460 = vmul.f32 %v342, %v444
    %v461 = vmul.f32 %v345, %v445
    %v462 = vmul.f32 %v350, %v446
    %v463 = vmul.f32 %v353, %v447
    %v464 = vmul.f32 %v358, %v448
    %v465 = vmul.f32 %v361, %v449
    %v466 = vmul.f32 %v366, %v450
    %v467 = vmul.f32 %v369, %v451
    %v468 = vpack.c.bf16 %v453, %v452
    %v469 = vpack.c.bf16 %v455, %v454
    %v470 = vpack.c.bf16 %v457, %v456
    %v471 = vpack.c.bf16 %v459, %v458
    %v472 = vpack.c.bf16 %v461, %v460
    %v473 = vpack.c.bf16 %v463, %v462
    %v474 = vpack.c.bf16 %v465, %v464
    %v475 = vpack.c.bf16 %v467, %v466
    %v484 = vunpack.c.l.b16 %v468
    %v485 = vunpack.c.h.b16 %v468
    %v486 = vunpack.c.l.b16 %v469
    %v487 = vunpack.c.h.b16 %v469
    %v488 = vunpack.c.l.b16 %v470
    %v489 = vunpack.c.h.b16 %v470
    %v490 = vunpack.c.l.b16 %v471
    %v491 = vunpack.c.h.b16 %v471
    %v492 = vunpack.c.l.b16 %v472
    %v493 = vunpack.c.h.b16 %v472
    %v494 = vunpack.c.l.b16 %v473
    %v495 = vunpack.c.h.b16 %v473
    %v496 = vunpack.c.l.b16 %v474
    %v497 = vunpack.c.h.b16 %v474
    %v498 = vunpack.c.l.b16 %v475
    %v499 = vunpack.c.h.b16 %v475
    %v500 = vpack.c.b16 %v484, %v484
    %v501 = vpack.c.b16 %v485, %v485
    %v502 = vpack.c.b16 %v486, %v486
    %v503 = vpack.c.b16 %v487, %v487
    %v504 = vpack.c.b16 %v488, %v488
    %v505 = vpack.c.b16 %v489, %v489
    %v506 = vpack.c.b16 %v490, %v490
    %v507 = vpack.c.b16 %v491, %v491
    %v508 = vpack.c.b16 %v492, %v492
    %v509 = vpack.c.b16 %v493, %v493
    %v510 = vpack.c.b16 %v494, %v494
    %v511 = vpack.c.b16 %v495, %v495
    %v512 = vpack.c.b16 %v496, %v496
    %v513 = vpack.c.b16 %v497, %v497
    %v514 = vpack.c.b16 %v498, %v498
    %v515 = vpack.c.b16 %v499, %v499
    %532 = vst [vmem:[#allocation7] sm:$0xf] %v500
    %533 = vst [vmem:[#allocation7 + $0x4] sm:$0xf] %v501
    %534 = vst [vmem:[#allocation7 + $0x8] sm:$0xf] %v502
    %535 = vst [vmem:[#allocation7 + $0xc] sm:$0xf] %v503
    %536 = vst [vmem:[#allocation7 + $0x10] sm:$0xf] %v504
    %537 = vst [vmem:[#allocation7 + $0x14] sm:$0xf] %v505
    %538 = vst [vmem:[#allocation7 + $0x18] sm:$0xf] %v506
    %539 = vst [vmem:[#allocation7 + $0x1c] sm:$0xf] %v507
    %540 = vst [vmem:[#allocation7 + $0x20] sm:$0xf] %v508
    %541 = vst [vmem:[#allocation7 + $0x24] sm:$0xf] %v509
    %542 = vst [vmem:[#allocation7 + $0x28] sm:$0xf] %v510
    %543 = vst [vmem:[#allocation7 + $0x2c] sm:$0xf] %v511
    %544 = vst [vmem:[#allocation7 + $0x30] sm:$0xf] %v512
    %545 = vst [vmem:[#allocation7 + $0x34] sm:$0xf] %v513
    %546 = vst [vmem:[#allocation7 + $0x38] sm:$0xf] %v514
    %547 = vst [vmem:[#allocation7 + $0x3c] sm:$0xf] %v515
    // Predicated region
    $region22: #{tpu_custom_call.1} parent=1 // pred_check
      _
    $region23: #{tpu_custom_call.1} parent=1 // pred_check_branch
      %549 = sbr.rel (0) target = $region25
    $region24: #{tpu_custom_call.1} parent=1 // pred_region
      %s551 = ssub.s32 1024, 1024
      %552 = vsyncadd [#allocation4], %s551
      %s553 = sshll.u32 [#allocation7], 4
      %s554 = int_to_ptr.vmem [resolvable:$true] %s553
      %559 = dma.vmem_to_hbm [thread:$0]  %s554, 1024, %s3, [#allocation4], 64, 64, 4
    $region25: #{tpu_custom_call.1} parent=1 // pred_fallthru
      _
    // Predicated region
    $region26: #{tpu_custom_call.1} parent=1 // pred_check
      _
    $region27: #{tpu_custom_call.1} parent=1 // pred_check_branch
      %561 = sbr.rel (0) target = $region29
    $region28: #{tpu_custom_call.1} parent=1 // pred_region
      %562 = dma.done [#allocation4], 1024
    $region29: #{tpu_custom_call.1} parent=1 // pred_fallthru
      _
    %563 = vsyncpa [#allocation3], 1
    %564 = vsyncpa [#allocation6], 1
    %565 = vsyncpa [#allocation4], 1

</llo_original>
